<compile_context>
chip_gen: v6e
topology: v6e:2x2x1
jax: 0.10.0
libtpu: 0.0.40
codegen_flags: <defaults>
</compile_context>

<pallas_src>
import functools

import jax
import jax.numpy as jnp
from jax.experimental import pallas as pl
from jax.experimental.pallas import tpu as pltpu

IN_F = 28 * 28      # 784
H1 = 128
H2 = 84
H2_PAD = 128        # hidden 84 padded to a full lane
OUT = 10
OUT_PAD = 128       # logits padded to a full lane for the MXU (registers only)
NEG_BIG = -1e30     # bias for padded logit columns -> softmax prob exactly 0
DEFAULT_TILE_B = 2048


def _mlp_kernel(x_ref, w1_ref, b1_ref, w2_ref, b2_ref, w3_ref, b3_ref, o_ref):
    # x arrives as f32; cast to bf16 in VMEM (no standalone HBM pre-pass).
    x = x_ref[...].astype(jnp.bfloat16)

    # Linear_1: [TB, 784] @ [784, 128] (bf16 MXU, f32 accumulate) + b1
    h1 = jnp.dot(x, w1_ref[...], preferred_element_type=jnp.float32) + b1_ref[...]
    # Sigmoid via a single EUP transcendental: sigmoid(h) = 0.5*(tanh(h/2)+1).
    h1 = 0.5 * (jnp.tanh(0.5 * h1) + 1.0)

    # Linear_2 (hidden padded 84->128; padded cols have zero weight & bias, so
    # their sigmoid(0)=0.5 values are killed by the zero rows of w3).
    h2 = jnp.dot(h1.astype(jnp.bfloat16), w2_ref[...],
                 preferred_element_type=jnp.float32) + b2_ref[...]
    h2 = 0.5 * (jnp.tanh(0.5 * h2) + 1.0)

    # Linear_3 (logits padded 10->128; padded cols get -1e30 bias).
    logits = jnp.dot(h2.astype(jnp.bfloat16), w3_ref[...],
                     preferred_element_type=jnp.float32) + b3_ref[...]

    # Numerically stable softmax over the lane axis (padded cols underflow to 0).
    m = jnp.max(logits, axis=1, keepdims=True)
    e = jnp.exp(logits - m)
    denom = jnp.sum(e, axis=1, keepdims=True)
    inv = 1.0 / denom                          # exact divide: rows sum to 1
    # Store only the 10 real probability columns (narrow output block).
    o_ref[...] = e[:, :OUT] * inv


def prepare_params(params):
    """One-time weight prep: transpose to (in, out), pad to lane widths, bf16.

    NOTE: correctness of the padded-hidden trick requires that rows H2..H2_PAD-1
    of w3_t stay exactly zero (they are constructed as zeros here).
    """
    w1, b1, w2, b2, w3, b3 = params
    w1_t = w1.T.astype(jnp.bfloat16)                                   # [784,128]
    b1_r = b1.reshape(1, H1).astype(jnp.float32)                       # [1,128]

    w2_t = jnp.zeros((H1, H2_PAD), jnp.float32).at[:, :H2].set(w2.T)
    w2_t = w2_t.astype(jnp.bfloat16)                                   # [128,128]
    b2_r = jnp.zeros((1, H2_PAD), jnp.float32).at[:, :H2].set(b2)      # [1,128]

    w3_t = jnp.zeros((H2_PAD, OUT_PAD), jnp.float32).at[:H2, :OUT].set(w3.T)
    w3_t = w3_t.astype(jnp.bfloat16)                                   # [128,128]
    b3_r = jnp.full((1, OUT_PAD), NEG_BIG, jnp.float32).at[:, :OUT].set(b3)

    return (w1_t, b1_r, w2_t, b2_r, w3_t, b3_r)


def _round_up(n, m):
    return (n + m - 1) // m * m


def _pick_tile(B, tile_b):
    """Batch tile: sublane-aligned, and >=2 grid steps when possible (v7x 2 TCs)."""
    if B <= 8:
        return B                     # single block equal to the full batch dim
    if B <= 2 * tile_b:
        return _round_up(-(-B // 2), 8)   # ~half the batch, rounded to sublane
    return tile_b


@functools.partial(jax.jit, static_argnames=("tile_b",))
def linear_model_forward(x_nchw, prepared, tile_b=DEFAULT_TILE_B):
    """x_nchw: [B, 1, 28, 28] f32. Returns softmax probs [B, 10] (f32)."""
    w1_t, b1_r, w2_t, b2_r, w3_t, b3_r = prepared
    B = x_nchw.shape[0]
    tb = _pick_tile(B, tile_b)

    # Free reshape only; no dtype cast, no batch padding in the wrapper.
    x = x_nchw.reshape(B, IN_F)

    out = pl.pallas_call(
        _mlp_kernel,
        out_shape=jax.ShapeDtypeStruct((B, OUT), jnp.float32),
        grid_spec=pl.GridSpec(
            grid=(pl.cdiv(B, tb),),                             # ragged last block OK
            in_specs=[
                pl.BlockSpec((tb, IN_F), lambda i: (i, 0)),        # x tile (f32)
                pl.BlockSpec((IN_F, H1), lambda i: (0, 0)),        # w1 (resident)
                pl.BlockSpec((1, H1), lambda i: (0, 0)),           # b1
                pl.BlockSpec((H1, H2_PAD), lambda i: (0, 0)),      # w2
                pl.BlockSpec((1, H2_PAD), lambda i: (0, 0)),       # b2
                pl.BlockSpec((H2_PAD, OUT_PAD), lambda i: (0, 0)), # w3
                pl.BlockSpec((1, OUT_PAD), lambda i: (0, 0)),      # b3
            ],
            out_specs=pl.BlockSpec((tb, OUT), lambda i: (i, 0)),   # narrow output
        ),
        compiler_params=pltpu.CompilerParams(
            dimension_semantics=("parallel",),   # shard batch tiles across TCs
            vmem_limit_bytes=48 << 20,           # < v7x's 64 MiB physical VMEM
        ),
    )(x, w1_t, b1_r, w2_t, b2_r, w3_t, b3_r)

    return out


def init_params(key):
    """torch.nn.Linear default init: U(-1/sqrt(in), 1/sqrt(in))."""
    def linear_init(key, out_f, in_f):
        kw, kb = jax.random.split(key)
        bound = 1.0 / (in_f ** 0.5)
        w = jax.random.uniform(kw, (out_f, in_f), jnp.float32, -bound, bound)
        b = jax.random.uniform(kb, (out_f,), jnp.float32, -bound, bound)
        return w, b

    k1, k2, k3 = jax.random.split(key, 3)
    w1, b1 = linear_init(k1, H1, IN_F)
    w2, b2 = linear_init(k2, H2, H1)
    w3, b3 = linear_init(k3, OUT, H2)
    return (w1, b1, w2, b2, w3, b3)


def _reference_forward(x_nchw, params):
    """Pure-JAX f32 reference for correctness checking."""
    w1, b1, w2, b2, w3, b3 = params
    x = x_nchw.reshape(x_nchw.shape[0], IN_F).astype(jnp.float32)
    h1 = jax.nn.sigmoid(x @ w1.T + b1)
    h2 = jax.nn.sigmoid(h1 @ w2.T + b2)
    logits = h2 @ w3.T + b3
    return jax.nn.softmax(logits, axis=1)


if __name__ == "__main__":
    key = jax.random.PRNGKey(0)
    k_in, k_params = jax.random.split(key)

    B = 8
    x = jax.random.normal(k_in, (B, 1, 28, 28), dtype=jnp.float32)
    params = init_params(k_params)
    prepared = prepare_params(params)

    probs = linear_model_forward(x, prepared)
    jax.block_until_ready(probs)

    assert probs.shape == (B, OUT)
    # Exact divide in the softmax -> rows sum to 1 up to f32 rounding.
    row_sums = jnp.sum(probs, axis=1)
    assert bool(jnp.allclose(row_sums, 1.0, atol=1e-3)), row_sums
    # Matches the f32 reference up to bf16-matmul error.
    ref = _reference_forward(x, params)
    assert bool(jnp.max(jnp.abs(probs - ref)) < 0.05)

    print("KERNEL_OK")
</pallas_src>

<mosaic_0001>
module attributes {stable_mosaic.version = 11 : i64} {
  func.func @_mlp_kernel(%arg0: i32, %arg1: memref<8x784xf32, #tpu.memory_space<vmem>>, %arg2: memref<784x128xbf16, #tpu.memory_space<vmem>>, %arg3: memref<1x128xf32, #tpu.memory_space<vmem>>, %arg4: memref<128x128xbf16, #tpu.memory_space<vmem>>, %arg5: memref<1x128xf32, #tpu.memory_space<vmem>>, %arg6: memref<128x128xbf16, #tpu.memory_space<vmem>>, %arg7: memref<1x128xf32, #tpu.memory_space<vmem>>, %arg8: memref<8x10xf32, #tpu.memory_space<vmem>>) attributes {dimension_semantics = [#tpu.dimension_semantics<parallel>], iteration_bounds = array<i64: 1>, scalar_prefetch = 0 : i64, scratch_operands = 0 : i64, tpu.core_type = #tpu.core_type<tc>, window_params = [{transform_indices = @transform_0, window_bounds = array<i64: 8, 784>}, {pipeline_mode = #tpu.pipeline_mode<synchronous>, transform_indices = @transform_1, window_bounds = array<i64: 784, 128>}, {pipeline_mode = #tpu.pipeline_mode<synchronous>, transform_indices = @transform_2, window_bounds = array<i64: 1, 128>}, {pipeline_mode = #tpu.pipeline_mode<synchronous>, transform_indices = @transform_3, window_bounds = array<i64: 128, 128>}, {pipeline_mode = #tpu.pipeline_mode<synchronous>, transform_indices = @transform_4, window_bounds = array<i64: 1, 128>}, {pipeline_mode = #tpu.pipeline_mode<synchronous>, transform_indices = @transform_5, window_bounds = array<i64: 128, 128>}, {pipeline_mode = #tpu.pipeline_mode<synchronous>, transform_indices = @transform_6, window_bounds = array<i64: 1, 128>}, {transform_indices = @transform_7, window_bounds = array<i64: 8, 10>}]} {
    %c0 = arith.constant 0 : index
    %c0_0 = arith.constant 0 : index
    %0 = vector.load %arg1[%c0, %c0_0] : memref<8x784xf32, #tpu.memory_space<vmem>>, vector<8x784xf32>
    %1 = arith.truncf %0 : vector<8x784xf32> to vector<8x784xbf16>
    %c0_1 = arith.constant 0 : index
    %c0_2 = arith.constant 0 : index
    %2 = vector.load %arg2[%c0_1, %c0_2] : memref<784x128xbf16, #tpu.memory_space<vmem>>, vector<784x128xbf16>
    %cst = arith.constant dense<0.000000e+00> : vector<8x128xf32>
    %3 = tpu.matmul %1, %2, %cst {dimension_numbers = #tpu.dot_dimension_numbers<[1], [0], [0], [1], [0, 0, 1, 1], [], []>} : vector<8x784xbf16>, vector<784x128xbf16>, vector<8x128xf32> -> vector<8x128xf32>
    %c0_3 = arith.constant 0 : index
    %c0_4 = arith.constant 0 : index
    %4 = vector.load %arg3[%c0_3, %c0_4] : memref<1x128xf32, #tpu.memory_space<vmem>>, vector<1x128xf32>
    %5 = vector.broadcast %4 : vector<1x128xf32> to vector<8x128xf32>
    %6 = arith.addf %3, %5 : vector<8x128xf32>
    %cst_5 = arith.constant 5.000000e-01 : f32
    %7 = vector.broadcast %cst_5 : f32 to vector<8x128xf32>
    %8 = arith.mulf %7, %6 : vector<8x128xf32>
    %9 = math.tanh %8 : vector<8x128xf32>
    %cst_6 = arith.constant 1.000000e+00 : f32
    %10 = vector.broadcast %cst_6 : f32 to vector<8x128xf32>
    %11 = arith.addf %9, %10 : vector<8x128xf32>
    %cst_7 = arith.constant 5.000000e-01 : f32
    %12 = vector.broadcast %cst_7 : f32 to vector<8x128xf32>
    %13 = arith.mulf %12, %11 : vector<8x128xf32>
    %14 = arith.truncf %13 : vector<8x128xf32> to vector<8x128xbf16>
    %c0_8 = arith.constant 0 : index
    %c0_9 = arith.constant 0 : index
    %15 = vector.load %arg4[%c0_8, %c0_9] : memref<128x128xbf16, #tpu.memory_space<vmem>>, vector<128x128xbf16>
    %cst_10 = arith.constant dense<0.000000e+00> : vector<8x128xf32>
    %16 = tpu.matmul %14, %15, %cst_10 {dimension_numbers = #tpu.dot_dimension_numbers<[1], [0], [0], [1], [0, 0, 1, 1], [], []>} : vector<8x128xbf16>, vector<128x128xbf16>, vector<8x128xf32> -> vector<8x128xf32>
    %c0_11 = arith.constant 0 : index
    %c0_12 = arith.constant 0 : index
    %17 = vector.load %arg5[%c0_11, %c0_12] : memref<1x128xf32, #tpu.memory_space<vmem>>, vector<1x128xf32>
    %18 = vector.broadcast %17 : vector<1x128xf32> to vector<8x128xf32>
    %19 = arith.addf %16, %18 : vector<8x128xf32>
    %cst_13 = arith.constant 5.000000e-01 : f32
    %20 = vector.broadcast %cst_13 : f32 to vector<8x128xf32>
    %21 = arith.mulf %20, %19 : vector<8x128xf32>
    %22 = math.tanh %21 : vector<8x128xf32>
    %cst_14 = arith.constant 1.000000e+00 : f32
    %23 = vector.broadcast %cst_14 : f32 to vector<8x128xf32>
    %24 = arith.addf %22, %23 : vector<8x128xf32>
    %cst_15 = arith.constant 5.000000e-01 : f32
    %25 = vector.broadcast %cst_15 : f32 to vector<8x128xf32>
    %26 = arith.mulf %25, %24 : vector<8x128xf32>
    %27 = arith.truncf %26 : vector<8x128xf32> to vector<8x128xbf16>
    %c0_16 = arith.constant 0 : index
    %c0_17 = arith.constant 0 : index
    %28 = vector.load %arg6[%c0_16, %c0_17] : memref<128x128xbf16, #tpu.memory_space<vmem>>, vector<128x128xbf16>
    %cst_18 = arith.constant dense<0.000000e+00> : vector<8x128xf32>
    %29 = tpu.matmul %27, %28, %cst_18 {dimension_numbers = #tpu.dot_dimension_numbers<[1], [0], [0], [1], [0, 0, 1, 1], [], []>} : vector<8x128xbf16>, vector<128x128xbf16>, vector<8x128xf32> -> vector<8x128xf32>
    %c0_19 = arith.constant 0 : index
    %c0_20 = arith.constant 0 : index
    %30 = vector.load %arg7[%c0_19, %c0_20] : memref<1x128xf32, #tpu.memory_space<vmem>>, vector<1x128xf32>
    %31 = vector.broadcast %30 : vector<1x128xf32> to vector<8x128xf32>
    %32 = arith.addf %29, %31 : vector<8x128xf32>
    %cst_21 = arith.constant dense<0xFF800000> : vector<8xf32>
    %33 = vector.multi_reduction <maximumf>, %32, %cst_21 [1] : vector<8x128xf32> to vector<8xf32>
    %34 = vector.shape_cast %33 : vector<8xf32> to vector<8x1xf32>
    %35 = vector.broadcast %34 : vector<8x1xf32> to vector<8x128xf32>
    %36 = arith.subf %32, %35 : vector<8x128xf32>
    %37 = math.exp %36 : vector<8x128xf32>
    %cst_22 = arith.constant dense<0.000000e+00> : vector<8xf32>
    %38 = vector.multi_reduction <add>, %37, %cst_22 [1] : vector<8x128xf32> to vector<8xf32>
    %39 = vector.shape_cast %38 : vector<8xf32> to vector<8x1xf32>
    %cst_23 = arith.constant 1.000000e+00 : f32
    %40 = vector.broadcast %cst_23 : f32 to vector<8x1xf32>
    %41 = arith.divf %40, %39 : vector<8x1xf32>
    %42 = vector.extract_strided_slice %37 {offsets = [0, 0], sizes = [8, 10], strides = [1, 1]} : vector<8x128xf32> to vector<8x10xf32>
    %43 = vector.broadcast %41 : vector<8x1xf32> to vector<8x10xf32>
    %44 = arith.mulf %42, %43 : vector<8x10xf32>
    %c0_24 = arith.constant 0 : index
    %c0_25 = arith.constant 0 : index
    %45 = vector.load %arg8[%c0_24, %c0_25] : memref<8x10xf32, #tpu.memory_space<vmem>>, vector<8x10xf32>
    tpu.vector_store %arg8[%c0_24, %c0_25], %44 {strides = array<i32>} : memref<8x10xf32, #tpu.memory_space<vmem>>, vector<8x10xf32>,
    return
  }
  func.func @transform_0(%arg0: i32) -> (i32, i32) {
    %c0_i32 = arith.constant 0 : i32
    %c0_i32_0 = arith.constant 0 : i32
    return %arg0, %c0_i32 : i32, i32
  }
  func.func @transform_1(%arg0: i32) -> (i32, i32) {
    %c0_i32 = arith.constant 0 : i32
    %c0_i32_0 = arith.constant 0 : i32
    %c0_i32_1 = arith.constant 0 : i32
    return %c0_i32, %c0_i32_0 : i32, i32
  }
  func.func @transform_2(%arg0: i32) -> (i32, i32) {
    %c0_i32 = arith.constant 0 : i32
    %c0_i32_0 = arith.constant 0 : i32
    %c0_i32_1 = arith.constant 0 : i32
    return %c0_i32, %c0_i32_0 : i32, i32
  }
  func.func @transform_3(%arg0: i32) -> (i32, i32) {
    %c0_i32 = arith.constant 0 : i32
    %c0_i32_0 = arith.constant 0 : i32
    %c0_i32_1 = arith.constant 0 : i32
    return %c0_i32, %c0_i32_0 : i32, i32
  }
  func.func @transform_4(%arg0: i32) -> (i32, i32) {
    %c0_i32 = arith.constant 0 : i32
    %c0_i32_0 = arith.constant 0 : i32
    %c0_i32_1 = arith.constant 0 : i32
    return %c0_i32, %c0_i32_0 : i32, i32
  }
  func.func @transform_5(%arg0: i32) -> (i32, i32) {
    %c0_i32 = arith.constant 0 : i32
    %c0_i32_0 = arith.constant 0 : i32
    %c0_i32_1 = arith.constant 0 : i32
    return %c0_i32, %c0_i32_0 : i32, i32
  }
  func.func @transform_6(%arg0: i32) -> (i32, i32) {
    %c0_i32 = arith.constant 0 : i32
    %c0_i32_0 = arith.constant 0 : i32
    %c0_i32_1 = arith.constant 0 : i32
    return %c0_i32, %c0_i32_0 : i32, i32
  }
  func.func @transform_7(%arg0: i32) -> (i32, i32) {
    %c0_i32 = arith.constant 0 : i32
    %c0_i32_0 = arith.constant 0 : i32
    return %arg0, %c0_i32 : i32, i32
  }
}

</mosaic_0001>

<llo_original>
// kernel: linear_model_forward.1
$region0: #{linear_model_forward.1}
  #allocation0 [shape = 'u32[]', space=smem, size = 0x4, offset = 0x4, fixed_abs, tag = 'smem constant byte address 0x4 - core index']
  #allocation1 [shape = 'u32[144,128]{1,0:T(1,128)}', space=vmem, size = 0x12000, scoped, tag = 'internal scratch']
  %s0 = inlined_call_operand.vmem [shape: f32[8,784], index: 0, kind: input, shape index: {}]
  %s1 = inlined_call_operand.vmem [shape: bf16[784,128], index: 1, kind: input, shape index: {}]
  %s2 = inlined_call_operand.vmem [shape: f32[1,128], index: 2, kind: input, shape index: {}]
  %s3 = inlined_call_operand.vmem [shape: bf16[128,128], index: 3, kind: input, shape index: {}]
  %s4 = inlined_call_operand.vmem [shape: f32[1,128], index: 4, kind: input, shape index: {}]
  %s5 = inlined_call_operand.vmem [shape: bf16[128,128], index: 5, kind: input, shape index: {}]
  %s6 = inlined_call_operand.vmem [shape: f32[1,128], index: 6, kind: input, shape index: {}]
  %s7 = inlined_call_operand.hbm [shape: f32[8,10], index: 7, kind: output, shape index: {}]
  %s8 = sld [smem:[#allocation0]]
  $region38: #{linear_model_forward.1} parent=0
    _
  %s10 = ssub.s32 1, %s8
  %s11 = scalar_select 0, %s10, %s8
  $region1: #{linear_model_forward.1} parent=0
    #allocation2 [shape = 'u8[4096]{0}', space=vmem, size = 0x1000, scoped, tag = 'output window, operand 0, single buffered']
    #allocation3 [shape = 's32[1]{0}', space=sflag, size = 0x4, scoped, tag = 'scoped memory for linear_model_forward.1']
    %12 = vsyncpa [#allocation3], 0
    // Predicated region
    $region2: #{linear_model_forward.1} parent=1 // pred_check
      _
    $region3: #{linear_model_forward.1} parent=1 // pred_check_branch
      %14 = sbr.rel (0) target = $region5
    $region4: #{linear_model_forward.1} parent=1 // pred_region
      _
    $region5: #{linear_model_forward.1} parent=1 // pred_fallthru
      _
    // Predicated region
    $region6: #{linear_model_forward.1} parent=1 // pred_check
      _
    $region7: #{linear_model_forward.1} parent=1 // pred_check_branch
      %16 = sbr.rel (0) target = $region9
    $region8: #{linear_model_forward.1} parent=1 // pred_region
      _
    $region9: #{linear_model_forward.1} parent=1 // pred_fallthru
      _
    // Predicated region
    $region10: #{linear_model_forward.1} parent=1 // pred_check
      _
    $region11: #{linear_model_forward.1} parent=1 // pred_check_branch
      %18 = sbr.rel (0) target = $region13
    $region12: #{linear_model_forward.1} parent=1 // pred_region
      _
    $region13: #{linear_model_forward.1} parent=1 // pred_fallthru
      _
    // Predicated region
    $region14: #{linear_model_forward.1} parent=1 // pred_check
      _
    $region15: #{linear_model_forward.1} parent=1 // pred_check_branch
      %20 = sbr.rel (0) target = $region17
    $region16: #{linear_model_forward.1} parent=1 // pred_region
      _
    $region17: #{linear_model_forward.1} parent=1 // pred_fallthru
      _
    // Predicated region
    $region18: #{linear_model_forward.1} parent=1 // pred_check
      _
    $region19: #{linear_model_forward.1} parent=1 // pred_check_branch
      %22 = sbr.rel (0) target = $region21
    $region20: #{linear_model_forward.1} parent=1 // pred_region
      _
    $region21: #{linear_model_forward.1} parent=1 // pred_fallthru
      _
    // Predicated region
    $region22: #{linear_model_forward.1} parent=1 // pred_check
      _
    $region23: #{linear_model_forward.1} parent=1 // pred_check_branch
      %24 = sbr.rel (0) target = $region25
    $region24: #{linear_model_forward.1} parent=1 // pred_region
      _
    $region25: #{linear_model_forward.1} parent=1 // pred_fallthru
      _
    // Predicated region
    $region26: #{linear_model_forward.1} parent=1 // pred_check
      _
    $region27: #{linear_model_forward.1} parent=1 // pred_check_branch
      %26 = sbr.rel (0) target = $region29
    $region28: #{linear_model_forward.1} parent=1 // pred_region
      _
    $region29: #{linear_model_forward.1} parent=1 // pred_fallthru
      _
    %v28 = vld [vmem:[%s0] sm:$0xff]
    %v29 = vld [vmem:[%s0 + $0x8] sm:$0xff]
    %v30 = vld [vmem:[%s0 + $0x10] sm:$0xff]
    %v31 = vld [vmem:[%s0 + $0x18] sm:$0xff]
    %v32 = vld [vmem:[%s0 + $0x20] sm:$0xff]
    %v33 = vld [vmem:[%s0 + $0x28] sm:$0xff]
    %v34 = vld [vmem:[%s0 + $0x30] sm:$0xff]
    %v35 = vpack.c.bf16 %v28, %v28
    %v36 = vpack.c.bf16 %v29, %v29
    %v37 = vpack.c.bf16 %v30, %v30
    %v38 = vpack.c.bf16 %v31, %v31
    %v39 = vpack.c.bf16 %v32, %v32
    %v40 = vpack.c.bf16 %v33, %v33
    %v41 = vpack.c.bf16 %v34, %v34
    %v42 = vld [vmem:[%s1] sm:$0xf]
    %v43 = vld [vmem:[%s1 + $0x4] sm:$0xf]
    %v44 = vld [vmem:[%s1 + $0x8] sm:$0xf]
    %v45 = vld [vmem:[%s1 + $0xc] sm:$0xf]
    %v46 = vld [vmem:[%s1 + $0x10] sm:$0xf]
    %v47 = vld [vmem:[%s1 + $0x14] sm:$0xf]
    %v48 = vld [vmem:[%s1 + $0x18] sm:$0xf]
    %v49 = vld [vmem:[%s1 + $0x1c] sm:$0xf]
    %v50 = vld [vmem:[%s1 + $0x20] sm:$0xf]
    %v51 = vld [vmem:[%s1 + $0x24] sm:$0xf]
    %v52 = vld [vmem:[%s1 + $0x28] sm:$0xf]
    %v53 = vld [vmem:[%s1 + $0x2c] sm:$0xf]
    %v54 = vld [vmem:[%s1 + $0x30] sm:$0xf]
    %v55 = vld [vmem:[%s1 + $0x34] sm:$0xf]
    %v56 = vld [vmem:[%s1 + $0x38] sm:$0xf]
    %v57 = vld [vmem:[%s1 + $0x3c] sm:$0xf]
    %v58 = vld [vmem:[%s1 + $0x40] sm:$0xf]
    %v59 = vld [vmem:[%s1 + $0x44] sm:$0xf]
    %v60 = vld [vmem:[%s1 + $0x48] sm:$0xf]
    %v61 = vld [vmem:[%s1 + $0x4c] sm:$0xf]
    %v62 = vld [vmem:[%s1 + $0x50] sm:$0xf]
    %v63 = vld [vmem:[%s1 + $0x54] sm:$0xf]
    %v64 = vld [vmem:[%s1 + $0x58] sm:$0xf]
    %v65 = vld [vmem:[%s1 + $0x5c] sm:$0xf]
    %v66 = vld [vmem:[%s1 + $0x60] sm:$0xf]
    %v67 = vld [vmem:[%s1 + $0x64] sm:$0xf]
    %v68 = vld [vmem:[%s1 + $0x68] sm:$0xf]
    %v69 = vld [vmem:[%s1 + $0x6c] sm:$0xf]
    %v70 = vld [vmem:[%s1 + $0x70] sm:$0xf]
    %v71 = vld [vmem:[%s1 + $0x74] sm:$0xf]
    %v72 = vld [vmem:[%s1 + $0x78] sm:$0xf]
    %v73 = vld [vmem:[%s1 + $0x7c] sm:$0xf]
    %v74 = vld [vmem:[%s1 + $0x80] sm:$0xf]
    %v75 = vld [vmem:[%s1 + $0x84] sm:$0xf]
    %v76 = vld [vmem:[%s1 + $0x88] sm:$0xf]
    %v77 = vld [vmem:[%s1 + $0x8c] sm:$0xf]
    %v78 = vld [vmem:[%s1 + $0x90] sm:$0xf]
    %v79 = vld [vmem:[%s1 + $0x94] sm:$0xf]
    %v80 = vld [vmem:[%s1 + $0x98] sm:$0xf]
    %v81 = vld [vmem:[%s1 + $0x9c] sm:$0xf]
    %v82 = vld [vmem:[%s1 + $0xa0] sm:$0xf]
    %v83 = vld [vmem:[%s1 + $0xa4] sm:$0xf]
    %v84 = vld [vmem:[%s1 + $0xa8] sm:$0xf]
    %v85 = vld [vmem:[%s1 + $0xac] sm:$0xf]
    %v86 = vld [vmem:[%s1 + $0xb0] sm:$0xf]
    %v87 = vld [vmem:[%s1 + $0xb4] sm:$0xf]
    %v88 = vld [vmem:[%s1 + $0xb8] sm:$0xf]
    %v89 = vld [vmem:[%s1 + $0xbc] sm:$0xf]
    %v90 = vld [vmem:[%s1 + $0xc0] sm:$0xf]
    %v91 = vld [vmem:[%s1 + $0xc4] sm:$0xf]
    %v92 = vld [vmem:[%s1 + $0xc8] sm:$0xf]
    %v93 = vld [vmem:[%s1 + $0xcc] sm:$0xf]
    %v94 = vld [vmem:[%s1 + $0xd0] sm:$0xf]
    %v95 = vld [vmem:[%s1 + $0xd4] sm:$0xf]
    %v96 = vld [vmem:[%s1 + $0xd8] sm:$0xf]
    %v97 = vld [vmem:[%s1 + $0xdc] sm:$0xf]
    %v98 = vld [vmem:[%s1 + $0xe0] sm:$0xf]
    %v99 = vld [vmem:[%s1 + $0xe4] sm:$0xf]
    %v100 = vld [vmem:[%s1 + $0xe8] sm:$0xf]
    %v101 = vld [vmem:[%s1 + $0xec] sm:$0xf]
    %v102 = vld [vmem:[%s1 + $0xf0] sm:$0xf]
    %v103 = vld [vmem:[%s1 + $0xf4] sm:$0xf]
    %v104 = vld [vmem:[%s1 + $0xf8] sm:$0xf]
    %v105 = vld [vmem:[%s1 + $0xfc] sm:$0xf]
    %v106 = vld [vmem:[%s1 + $0x100] sm:$0xf]
    %v107 = vld [vmem:[%s1 + $0x104] sm:$0xf]
    %v108 = vld [vmem:[%s1 + $0x108] sm:$0xf]
    %v109 = vld [vmem:[%s1 + $0x10c] sm:$0xf]
    %v110 = vld [vmem:[%s1 + $0x110] sm:$0xf]
    %v111 = vld [vmem:[%s1 + $0x114] sm:$0xf]
    %v112 = vld [vmem:[%s1 + $0x118] sm:$0xf]
    %v113 = vld [vmem:[%s1 + $0x11c] sm:$0xf]
    %v114 = vld [vmem:[%s1 + $0x120] sm:$0xf]
    %v115 = vld [vmem:[%s1 + $0x124] sm:$0xf]
    %v116 = vld [vmem:[%s1 + $0x128] sm:$0xf]
    %v117 = vld [vmem:[%s1 + $0x12c] sm:$0xf]
    %v118 = vld [vmem:[%s1 + $0x130] sm:$0xf]
    %v119 = vld [vmem:[%s1 + $0x134] sm:$0xf]
    %v120 = vld [vmem:[%s1 + $0x138] sm:$0xf]
    %v121 = vld [vmem:[%s1 + $0x13c] sm:$0xf]
    %v122 = vld [vmem:[%s1 + $0x140] sm:$0xf]
    %v123 = vld [vmem:[%s1 + $0x144] sm:$0xf]
    %v124 = vld [vmem:[%s1 + $0x148] sm:$0xf]
    %v125 = vld [vmem:[%s1 + $0x14c] sm:$0xf]
    %v126 = vld [vmem:[%s1 + $0x150] sm:$0xf]
    %v127 = vld [vmem:[%s1 + $0x154] sm:$0xf]
    %v128 = vld [vmem:[%s1 + $0x158] sm:$0xf]
    %v129 = vld [vmem:[%s1 + $0x15c] sm:$0xf]
    %v130 = vld [vmem:[%s1 + $0x160] sm:$0xf]
    %v131 = vld [vmem:[%s1 + $0x164] sm:$0xf]
    %v132 = vld [vmem:[%s1 + $0x168] sm:$0xf]
    %v133 = vld [vmem:[%s1 + $0x16c] sm:$0xf]
    %v134 = vld [vmem:[%s1 + $0x170] sm:$0xf]
    %v135 = vld [vmem:[%s1 + $0x174] sm:$0xf]
    %v136 = vld [vmem:[%s1 + $0x178] sm:$0xf]
    %v137 = vld [vmem:[%s1 + $0x17c] sm:$0xf]
    %v138 = vld [vmem:[%s1 + $0x180] sm:$0xf]
    %v139 = vld [vmem:[%s1 + $0x184] sm:$0xf]
    %v140 = vld [vmem:[%s2] sm:$0x1]
    %v142 = vlaneseq
    %v143 = vshrl.u32 %v142, 7
    %v144 = vsub.s32 0, %v143
    %v145 = vrot.slane %v140, %v144
    %v245 = vunpack.c.l.b16 %v42
    %v246 = vunpack.c.l.b16 %v43
    %v247 = vunpack.c.l.b16 %v44
    %v248 = vunpack.c.l.b16 %v45
    %v249 = vunpack.c.l.b16 %v46
    %v250 = vunpack.c.l.b16 %v47
    %v251 = vunpack.c.l.b16 %v48
    %v252 = vunpack.c.l.b16 %v49
    %v253 = vunpack.c.l.b16 %v50
    %v254 = vunpack.c.l.b16 %v51
    %v255 = vunpack.c.l.b16 %v52
    %v256 = vunpack.c.l.b16 %v53
    %v257 = vunpack.c.l.b16 %v54
    %v258 = vunpack.c.l.b16 %v55
    %v259 = vunpack.c.l.b16 %v56
    %v260 = vunpack.c.l.b16 %v57
    %v261 = vunpack.c.l.b16 %v58
    %v262 = vunpack.c.l.b16 %v59
    %v263 = vunpack.c.l.b16 %v60
    %v264 = vunpack.c.l.b16 %v61
    %v265 = vunpack.c.l.b16 %v62
    %v266 = vunpack.c.l.b16 %v63
    %v267 = vunpack.c.l.b16 %v64
    %v268 = vunpack.c.l.b16 %v65
    %v269 = vunpack.c.l.b16 %v66
    %v270 = vunpack.c.l.b16 %v67
    %v271 = vunpack.c.l.b16 %v68
    %v272 = vunpack.c.l.b16 %v69
    %v273 = vunpack.c.l.b16 %v70
    %v274 = vunpack.c.l.b16 %v71
    %v275 = vunpack.c.l.b16 %v72
    %v276 = vunpack.c.l.b16 %v73
    %v277 = vunpack.c.l.b16 %v74
    %v278 = vunpack.c.l.b16 %v75
    %v279 = vunpack.c.l.b16 %v76
    %v280 = vunpack.c.l.b16 %v77
    %v281 = vunpack.c.l.b16 %v78
    %v282 = vunpack.c.l.b16 %v79
    %v283 = vunpack.c.l.b16 %v80
    %v284 = vunpack.c.l.b16 %v81
    %v285 = vunpack.c.l.b16 %v82
    %v286 = vunpack.c.l.b16 %v83
    %v287 = vunpack.c.l.b16 %v84
    %v288 = vunpack.c.l.b16 %v85
    %v289 = vunpack.c.l.b16 %v86
    %v290 = vunpack.c.l.b16 %v87
    %v291 = vunpack.c.l.b16 %v88
    %v292 = vunpack.c.l.b16 %v89
    %v293 = vunpack.c.l.b16 %v90
    %v294 = vunpack.c.l.b16 %v91
    %v295 = vunpack.c.l.b16 %v92
    %v296 = vunpack.c.l.b16 %v93
    %v297 = vunpack.c.l.b16 %v94
    %v298 = vunpack.c.l.b16 %v95
    %v299 = vunpack.c.l.b16 %v96
    %v300 = vunpack.c.l.b16 %v97
    %v301 = vunpack.c.l.b16 %v98
    %v302 = vunpack.c.l.b16 %v99
    %v303 = vunpack.c.l.b16 %v100
    %v304 = vunpack.c.l.b16 %v101
    %v305 = vunpack.c.l.b16 %v102
    %v306 = vunpack.c.l.b16 %v103
    %v307 = vunpack.c.l.b16 %v104
    %v308 = vunpack.c.l.b16 %v105
    %v309 = vunpack.c.l.b16 %v106
    %v310 = vunpack.c.l.b16 %v107
    %v311 = vunpack.c.l.b16 %v108
    %v312 = vunpack.c.l.b16 %v109
    %v313 = vunpack.c.l.b16 %v110
    %v314 = vunpack.c.l.b16 %v111
    %v315 = vunpack.c.l.b16 %v112
    %v316 = vunpack.c.l.b16 %v113
    %v317 = vunpack.c.l.b16 %v114
    %v318 = vunpack.c.l.b16 %v115
    %v319 = vunpack.c.l.b16 %v116
    %v320 = vunpack.c.l.b16 %v117
    %v321 = vunpack.c.l.b16 %v118
    %v322 = vunpack.c.l.b16 %v119
    %v323 = vunpack.c.l.b16 %v120
    %v324 = vunpack.c.l.b16 %v121
    %v325 = vunpack.c.l.b16 %v122
    %v326 = vunpack.c.l.b16 %v123
    %v327 = vunpack.c.l.b16 %v124
    %v328 = vunpack.c.l.b16 %v125
    %v329 = vunpack.c.l.b16 %v126
    %v330 = vunpack.c.l.b16 %v127
    %v331 = vunpack.c.l.b16 %v128
    %v332 = vunpack.c.l.b16 %v129
    %v333 = vunpack.c.l.b16 %v130
    %v334 = vunpack.c.l.b16 %v131
    %v335 = vunpack.c.l.b16 %v132
    %v336 = vunpack.c.l.b16 %v133
    %v337 = vunpack.c.l.b16 %v134
    %v338 = vunpack.c.l.b16 %v135
    %v339 = vunpack.c.l.b16 %v136
    %v340 = vunpack.c.l.b16 %v137
    %v341 = vunpack.c.l.b16 %v138
    %v342 = vunpack.c.l.b16 %v139
    %v343 = vpack.c.b16 %v246, %v245
    %v344 = vpack.c.b16 %v248, %v247
    %v345 = vpack.c.b16 %v250, %v249
    %v346 = vpack.c.b16 %v252, %v251
    %v347 = vpack.c.b16 %v254, %v253
    %v348 = vpack.c.b16 %v256, %v255
    %v349 = vpack.c.b16 %v258, %v257
    %v350 = vpack.c.b16 %v260, %v259
    %v351 = vpack.c.b16 %v262, %v261
    %v352 = vpack.c.b16 %v264, %v263
    %v353 = vpack.c.b16 %v266, %v265
    %v354 = vpack.c.b16 %v268, %v267
    %v355 = vpack.c.b16 %v270, %v269
    %v356 = vpack.c.b16 %v272, %v271
    %v357 = vpack.c.b16 %v274, %v273
    %v358 = vpack.c.b16 %v276, %v275
    %v359 = vpack.c.b16 %v278, %v277
    %v360 = vpack.c.b16 %v280, %v279
    %v361 = vpack.c.b16 %v282, %v281
    %v362 = vpack.c.b16 %v284, %v283
    %v363 = vpack.c.b16 %v286, %v285
    %v364 = vpack.c.b16 %v288, %v287
    %v365 = vpack.c.b16 %v290, %v289
    %v366 = vpack.c.b16 %v292, %v291
    %v367 = vpack.c.b16 %v294, %v293
    %v368 = vpack.c.b16 %v296, %v295
    %v369 = vpack.c.b16 %v298, %v297
    %v370 = vpack.c.b16 %v300, %v299
    %v371 = vpack.c.b16 %v302, %v301
    %v372 = vpack.c.b16 %v304, %v303
    %v373 = vpack.c.b16 %v306, %v305
    %v374 = vpack.c.b16 %v308, %v307
    %v375 = vpack.c.b16 %v310, %v309
    %v376 = vpack.c.b16 %v312, %v311
    %v377 = vpack.c.b16 %v314, %v313
    %v378 = vpack.c.b16 %v316, %v315
    %v379 = vpack.c.b16 %v318, %v317
    %v380 = vpack.c.b16 %v320, %v319
    %v381 = vpack.c.b16 %v322, %v321
    %v382 = vpack.c.b16 %v324, %v323
    %v383 = vpack.c.b16 %v326, %v325
    %v384 = vpack.c.b16 %v328, %v327
    %v385 = vpack.c.b16 %v330, %v329
    %v386 = vpack.c.b16 %v332, %v331
    %v387 = vpack.c.b16 %v334, %v333
    %v388 = vpack.c.b16 %v336, %v335
    %v389 = vpack.c.b16 %v338, %v337
    %v390 = vpack.c.b16 %v340, %v339
    %v391 = vpack.c.b16 %v342, %v341
    %vm441 = vcmask 130048
    %v443 = vsel %vm441, %v41, 0
    %445 = vmatprep.subr.bf16.mxu0 0
    %446 = vmatpush1.bf16.msra.mxu0 %v350
    %447 = vmatprep.subr.bf16.mxu0 0
    %448 = vmatpush1.bf16.msra.mxu0 %v349
    %449 = vmatprep.subr.bf16.mxu0 0
    %450 = vmatpush1.bf16.msra.mxu0 %v348
    %451 = vmatprep.subr.bf16.mxu0 0
    %452 = vmatpush1.bf16.msra.mxu0 %v347
    %453 = vmatprep.subr.bf16.mxu0 0
    %454 = vmatpush1.bf16.msra.mxu0 %v346
    %455 = vmatprep.subr.bf16.mxu0 0
    %456 = vmatpush1.bf16.msra.mxu0 %v345
    %457 = vmatprep.subr.bf16.mxu0 0
    %458 = vmatpush1.bf16.msra.mxu0 %v344
    %459 = vmatprep.subr.bf16.mxu0 0
    %460 = vmatpush1.bf16.msra.mxu0 %v343
    %461 = vmatprep.subr.bf16.mxu0 0
    %462 = vmatpush2.bf16.msra.mxu0 %v358
    %463 = vmatprep.subr.bf16.mxu0 0
    %464 = vmatpush2.bf16.msra.mxu0 %v357
    %465 = vmatprep.subr.bf16.mxu0 0
    %466 = vmatpush2.bf16.msra.mxu0 %v356
    %467 = vmatprep.subr.bf16.mxu0 0
    %468 = vmatpush2.bf16.msra.mxu0 %v355
    %469 = vmatprep.subr.bf16.mxu0 0
    %470 = vmatpush2.bf16.msra.mxu0 %v354
    %471 = vmatprep.subr.bf16.mxu0 0
    %472 = vmatpush2.bf16.msra.mxu0 %v353
    %473 = vmatprep.subr.bf16.mxu0 0
    %474 = vmatpush2.bf16.msra.mxu0 %v352
    %475 = vmatprep.subr.bf16.mxu0 0
    %476 = vmatpush2.bf16.msra.mxu0 %v351
    %477 = vmatprep.mubr.bf16.mxu0 %v36
    %478 = vmatmul.mubr.bf16.gmra.mxu0 %v35
    %v479 = vpop.f32.mrf.mxu0
    %v480 = vadd.f32 %v145, %v479
    %v481 = vpop.f32.mrf.mxu0
    %v482 = vpop.f32.mrf.mxu0
    %v483 = vpop.f32.mrf.mxu0
    %484 = vdwg.mxu0
    %485 = vmatprep.subr.bf16.mxu0 0
    %486 = vmatpush1.bf16.msra.mxu0 %v366
    %487 = vmatprep.subr.bf16.mxu0 0
    %488 = vmatpush1.bf16.msra.mxu0 %v365
    %489 = vmatprep.subr.bf16.mxu0 0
    %490 = vmatpush1.bf16.msra.mxu0 %v364
    %491 = vmatprep.subr.bf16.mxu0 0
    %492 = vmatpush1.bf16.msra.mxu0 %v363
    %493 = vmatprep.subr.bf16.mxu0 0
    %494 = vmatpush1.bf16.msra.mxu0 %v362
    %495 = vmatprep.subr.bf16.mxu0 0
    %496 = vmatpush1.bf16.msra.mxu0 %v361
    %497 = vmatprep.subr.bf16.mxu0 0
    %498 = vmatpush1.bf16.msra.mxu0 %v360
    %499 = vmatprep.subr.bf16.mxu0 0
    %500 = vmatpush1.bf16.msra.mxu0 %v359
    %501 = vmatprep.subr.bf16.mxu0 0
    %502 = vmatpush2.bf16.msra.mxu0 %v374
    %503 = vmatprep.subr.bf16.mxu0 0
    %504 = vmatpush2.bf16.msra.mxu0 %v373
    %505 = vmatprep.subr.bf16.mxu0 0
    %506 = vmatpush2.bf16.msra.mxu0 %v372
    %507 = vmatprep.subr.bf16.mxu0 0
    %508 = vmatpush2.bf16.msra.mxu0 %v371
    %509 = vmatprep.subr.bf16.mxu0 0
    %510 = vmatpush2.bf16.msra.mxu0 %v370
    %511 = vmatprep.subr.bf16.mxu0 0
    %512 = vmatpush2.bf16.msra.mxu0 %v369
    %513 = vmatprep.subr.bf16.mxu0 0
    %514 = vmatpush2.bf16.msra.mxu0 %v368
    %515 = vmatprep.subr.bf16.mxu0 0
    %516 = vmatpush2.bf16.msra.mxu0 %v367
    %517 = vmatprep.mubr.bf16.mxu0 %v38
    %518 = vmatmul.mubr.bf16.gmra.mxu0 %v37
    %v519 = vpop.f32.mrf.mxu0
    %v520 = vadd.f32 %v480, %v519
    %v521 = vpop.f32.mrf.mxu0
    %v522 = vpop.f32.mrf.mxu0
    %v523 = vpop.f32.mrf.mxu0
    %524 = vdwg.mxu0
    %525 = vmatprep.subr.bf16.mxu0 0
    %526 = vmatpush1.bf16.msra.mxu0 %v382
    %527 = vmatprep.subr.bf16.mxu0 0
    %528 = vmatpush1.bf16.msra.mxu0 %v381
    %529 = vmatprep.subr.bf16.mxu0 0
    %530 = vmatpush1.bf16.msra.mxu0 %v380
    %531 = vmatprep.subr.bf16.mxu0 0
    %532 = vmatpush1.bf16.msra.mxu0 %v379
    %533 = vmatprep.subr.bf16.mxu0 0
    %534 = vmatpush1.bf16.msra.mxu0 %v378
    %535 = vmatprep.subr.bf16.mxu0 0
    %536 = vmatpush1.bf16.msra.mxu0 %v377
    %537 = vmatprep.subr.bf16.mxu0 0
    %538 = vmatpush1.bf16.msra.mxu0 %v376
    %539 = vmatprep.subr.bf16.mxu0 0
    %540 = vmatpush1.bf16.msra.mxu0 %v375
    %541 = vmatprep.subr.bf16.mxu0 0
    %542 = vmatpush2.bf16.msra.mxu0 %v390
    %543 = vmatprep.subr.bf16.mxu0 0
    %544 = vmatpush2.bf16.msra.mxu0 %v389
    %545 = vmatprep.subr.bf16.mxu0 0
    %546 = vmatpush2.bf16.msra.mxu0 %v388
    %547 = vmatprep.subr.bf16.mxu0 0
    %548 = vmatpush2.bf16.msra.mxu0 %v387
    %549 = vmatprep.subr.bf16.mxu0 0
    %550 = vmatpush2.bf16.msra.mxu0 %v386
    %551 = vmatprep.subr.bf16.mxu0 0
    %552 = vmatpush2.bf16.msra.mxu0 %v385
    %553 = vmatprep.subr.bf16.mxu0 0
    %554 = vmatpush2.bf16.msra.mxu0 %v384
    %555 = vmatprep.subr.bf16.mxu0 0
    %556 = vmatpush2.bf16.msra.mxu0 %v383
    %557 = vmatprep.mubr.bf16.mxu0 %v40
    %558 = vmatmul.mubr.bf16.gmra.mxu0 %v39
    %v559 = vpop.f32.mrf.mxu0
    %v560 = vadd.f32 %v520, %v559
    %v561 = vpop.f32.mrf.mxu0
    %v562 = vpop.f32.mrf.mxu0
    %v563 = vpop.f32.mrf.mxu0
    %564 = vdwg.mxu0
    %565 = vmatprep.subr.bf16.mxu0 0
    %566 = vmatpush1.bf16.msra.mxu0 0
    %567 = vmatprep.subr.bf16.mxu0 0
    %568 = vmatpush1.bf16.msra.mxu0 0
    %569 = vmatprep.subr.bf16.mxu0 0
    %570 = vmatpush1.bf16.msra.mxu0 0
    %571 = vmatprep.subr.bf16.mxu0 0
    %572 = vmatpush1.bf16.msra.mxu0 0
    %573 = vmatprep.subr.bf16.mxu0 0
    %574 = vmatpush1.bf16.msra.mxu0 0
    %575 = vmatprep.subr.bf16.mxu0 0
    %576 = vmatpush1.bf16.msra.mxu0 0
    %577 = vmatprep.subr.bf16.mxu0 0
    %578 = vmatpush1.bf16.msra.mxu0 0
    %579 = vmatprep.subr.bf16.mxu0 0
    %580 = vmatpush1.bf16.msra.mxu0 %v391
    %581 = vmatprep.subr.bf16.mxu0 0
    %582 = vmatpush2.bf16.msra.mxu0 0
    %583 = vmatprep.subr.bf16.mxu0 0
    %584 = vmatpush2.bf16.msra.mxu0 0
    %585 = vmatprep.subr.bf16.mxu0 0
    %586 = vmatpush2.bf16.msra.mxu0 0
    %587 = vmatprep.subr.bf16.mxu0 0
    %588 = vmatpush2.bf16.msra.mxu0 0
    %589 = vmatprep.subr.bf16.mxu0 0
    %590 = vmatpush2.bf16.msra.mxu0 0
    %591 = vmatprep.subr.bf16.mxu0 0
    %592 = vmatpush2.bf16.msra.mxu0 0
    %593 = vmatprep.subr.bf16.mxu0 0
    %594 = vmatpush2.bf16.msra.mxu0 0
    %595 = vmatprep.subr.bf16.mxu0 0
    %596 = vmatpush2.bf16.msra.mxu0 0
    %597 = vmatprep.mubr.bf16.mxu0 0
    %598 = vmatmul.mubr.bf16.gmra.mxu0 %v443
    %v599 = vpop.f32.mrf.mxu0
    %v600 = vadd.f32 %v560, %v599
    %v601 = vpop.f32.mrf.mxu0
    %v602 = vpop.f32.mrf.mxu0
    %v603 = vpop.f32.mrf.mxu0
    %604 = vdwg.mxu0
    %v605 = vmul.f32 %v600, 0.5
    %v606 = vtanh.pop %v605
    %v607 = vadd.f32 %v606, 1.0
    %v608 = vmul.f32 %v607, 0.5
    %v609 = vpack.c.bf16 %v608, %v608
    %v610 = vld [vmem:[%s3] sm:$0xf]
    %v611 = vld [vmem:[%s3 + $0x4] sm:$0xf]
    %v612 = vld [vmem:[%s3 + $0x8] sm:$0xf]
    %v613 = vld [vmem:[%s3 + $0xc] sm:$0xf]
    %v614 = vld [vmem:[%s3 + $0x10] sm:$0xf]
    %v615 = vld [vmem:[%s3 + $0x14] sm:$0xf]
    %v616 = vld [vmem:[%s3 + $0x18] sm:$0xf]
    %v617 = vld [vmem:[%s3 + $0x1c] sm:$0xf]
    %v618 = vld [vmem:[%s3 + $0x20] sm:$0xf]
    %v619 = vld [vmem:[%s3 + $0x24] sm:$0xf]
    %v620 = vld [vmem:[%s3 + $0x28] sm:$0xf]
    %v621 = vld [vmem:[%s3 + $0x2c] sm:$0xf]
    %v622 = vld [vmem:[%s3 + $0x30] sm:$0xf]
    %v623 = vld [vmem:[%s3 + $0x34] sm:$0xf]
    %v624 = vld [vmem:[%s3 + $0x38] sm:$0xf]
    %v625 = vld [vmem:[%s3 + $0x3c] sm:$0xf]
    %v626 = vld [vmem:[%s4] sm:$0x1]
    %v628 = vlaneseq
    %v629 = vshrl.u32 %v628, 7
    %v630 = vsub.s32 0, %v629
    %v631 = vrot.slane %v626, %v630
    %v649 = vunpack.c.l.b16 %v610
    %v650 = vunpack.c.l.b16 %v611
    %v651 = vunpack.c.l.b16 %v612
    %v652 = vunpack.c.l.b16 %v613
    %v653 = vunpack.c.l.b16 %v614
    %v654 = vunpack.c.l.b16 %v615
    %v655 = vunpack.c.l.b16 %v616
    %v656 = vunpack.c.l.b16 %v617
    %v657 = vunpack.c.l.b16 %v618
    %v658 = vunpack.c.l.b16 %v619
    %v659 = vunpack.c.l.b16 %v620
    %v660 = vunpack.c.l.b16 %v621
    %v661 = vunpack.c.l.b16 %v622
    %v662 = vunpack.c.l.b16 %v623
    %v663 = vunpack.c.l.b16 %v624
    %v664 = vunpack.c.l.b16 %v625
    %v665 = vpack.c.b16 %v650, %v649
    %v666 = vpack.c.b16 %v652, %v651
    %v667 = vpack.c.b16 %v654, %v653
    %v668 = vpack.c.b16 %v656, %v655
    %v669 = vpack.c.b16 %v658, %v657
    %v670 = vpack.c.b16 %v660, %v659
    %v671 = vpack.c.b16 %v662, %v661
    %v672 = vpack.c.b16 %v664, %v663
    %681 = vmatprep.subr.bf16.mxu0 0
    %682 = vmatpush1.bf16.msra.mxu0 %v672
    %683 = vmatprep.subr.bf16.mxu0 0
    %684 = vmatpush1.bf16.msra.mxu0 %v671
    %685 = vmatprep.subr.bf16.mxu0 0
    %686 = vmatpush1.bf16.msra.mxu0 %v670
    %687 = vmatprep.subr.bf16.mxu0 0
    %688 = vmatpush1.bf16.msra.mxu0 %v669
    %689 = vmatprep.subr.bf16.mxu0 0
    %690 = vmatpush1.bf16.msra.mxu0 %v668
    %691 = vmatprep.subr.bf16.mxu0 0
    %692 = vmatpush1.bf16.msra.mxu0 %v667
    %693 = vmatprep.subr.bf16.mxu0 0
    %694 = vmatpush1.bf16.msra.mxu0 %v666
    %695 = vmatprep.subr.bf16.mxu0 0
    %696 = vmatpush1.bf16.msra.mxu0 %v665
    %697 = vmatprep.subr.bf16.mxu0 0
    %698 = vmatpush2.bf16.msra.mxu0 0
    %699 = vmatprep.subr.bf16.mxu0 0
    %700 = vmatpush2.bf16.msra.mxu0 0
    %701 = vmatprep.subr.bf16.mxu0 0
    %702 = vmatpush2.bf16.msra.mxu0 0
    %703 = vmatprep.subr.bf16.mxu0 0
    %704 = vmatpush2.bf16.msra.mxu0 0
    %705 = vmatprep.subr.bf16.mxu0 0
    %706 = vmatpush2.bf16.msra.mxu0 0
    %707 = vmatprep.subr.bf16.mxu0 0
    %708 = vmatpush2.bf16.msra.mxu0 0
    %709 = vmatprep.subr.bf16.mxu0 0
    %710 = vmatpush2.bf16.msra.mxu0 0
    %711 = vmatprep.subr.bf16.mxu0 0
    %712 = vmatpush2.bf16.msra.mxu0 0
    %713 = vmatprep.mubr.bf16.mxu0 0
    %714 = vmatmul.mubr.bf16.gmra.mxu0 %v609
    %v715 = vpop.f32.mrf.mxu0
    %v716 = vadd.f32 %v631, %v715
    %v717 = vpop.f32.mrf.mxu0
    %v718 = vpop.f32.mrf.mxu0
    %v719 = vpop.f32.mrf.mxu0
    %720 = vdwg.mxu0
    %v721 = vmul.f32 %v716, 0.5
    %v722 = vtanh.pop %v721
    %v723 = vadd.f32 %v722, 1.0
    %v724 = vmul.f32 %v723, 0.5
    %v725 = vpack.c.bf16 %v724, %v724
    %v726 = vld [vmem:[%s5] sm:$0xf]
    %v727 = vld [vmem:[%s5 + $0x4] sm:$0xf]
    %v728 = vld [vmem:[%s5 + $0x8] sm:$0xf]
    %v729 = vld [vmem:[%s5 + $0xc] sm:$0xf]
    %v730 = vld [vmem:[%s5 + $0x10] sm:$0xf]
    %v731 = vld [vmem:[%s5 + $0x14] sm:$0xf]
    %v732 = vld [vmem:[%s5 + $0x18] sm:$0xf]
    %v733 = vld [vmem:[%s5 + $0x1c] sm:$0xf]
    %v734 = vld [vmem:[%s5 + $0x20] sm:$0xf]
    %v735 = vld [vmem:[%s5 + $0x24] sm:$0xf]
    %v736 = vld [vmem:[%s5 + $0x28] sm:$0xf]
    %v737 = vld [vmem:[%s5 + $0x2c] sm:$0xf]
    %v738 = vld [vmem:[%s5 + $0x30] sm:$0xf]
    %v739 = vld [vmem:[%s5 + $0x34] sm:$0xf]
    %v740 = vld [vmem:[%s5 + $0x38] sm:$0xf]
    %v741 = vld [vmem:[%s5 + $0x3c] sm:$0xf]
    %v742 = vld [vmem:[%s6] sm:$0x1]
    %v744 = vlaneseq
    %v745 = vshrl.u32 %v744, 7
    %v746 = vsub.s32 0, %v745
    %v747 = vrot.slane %v742, %v746
    %v765 = vunpack.c.l.b16 %v726
    %v766 = vunpack.c.l.b16 %v727
    %v767 = vunpack.c.l.b16 %v728
    %v768 = vunpack.c.l.b16 %v729
    %v769 = vunpack.c.l.b16 %v730
    %v770 = vunpack.c.l.b16 %v731
    %v771 = vunpack.c.l.b16 %v732
    %v772 = vunpack.c.l.b16 %v733
    %v773 = vunpack.c.l.b16 %v734
    %v774 = vunpack.c.l.b16 %v735
    %v775 = vunpack.c.l.b16 %v736
    %v776 = vunpack.c.l.b16 %v737
    %v777 = vunpack.c.l.b16 %v738
    %v778 = vunpack.c.l.b16 %v739
    %v779 = vunpack.c.l.b16 %v740
    %v780 = vunpack.c.l.b16 %v741
    %v781 = vpack.c.b16 %v766, %v765
    %v782 = vpack.c.b16 %v768, %v767
    %v783 = vpack.c.b16 %v770, %v769
    %v784 = vpack.c.b16 %v772, %v771
    %v785 = vpack.c.b16 %v774, %v773
    %v786 = vpack.c.b16 %v776, %v775
    %v787 = vpack.c.b16 %v778, %v777
    %v788 = vpack.c.b16 %v780, %v779
    %797 = vmatprep.subr.bf16.mxu0 0
    %798 = vmatpush1.bf16.msra.mxu0 %v788
    %799 = vmatprep.subr.bf16.mxu0 0
    %800 = vmatpush1.bf16.msra.mxu0 %v787
    %801 = vmatprep.subr.bf16.mxu0 0
    %802 = vmatpush1.bf16.msra.mxu0 %v786
    %803 = vmatprep.subr.bf16.mxu0 0
    %804 = vmatpush1.bf16.msra.mxu0 %v785
    %805 = vmatprep.subr.bf16.mxu0 0
    %806 = vmatpush1.bf16.msra.mxu0 %v784
    %807 = vmatprep.subr.bf16.mxu0 0
    %808 = vmatpush1.bf16.msra.mxu0 %v783
    %809 = vmatprep.subr.bf16.mxu0 0
    %810 = vmatpush1.bf16.msra.mxu0 %v782
    %811 = vmatprep.subr.bf16.mxu0 0
    %812 = vmatpush1.bf16.msra.mxu0 %v781
    %813 = vmatprep.subr.bf16.mxu0 0
    %814 = vmatpush2.bf16.msra.mxu0 0
    %815 = vmatprep.subr.bf16.mxu0 0
    %816 = vmatpush2.bf16.msra.mxu0 0
    %817 = vmatprep.subr.bf16.mxu0 0
    %818 = vmatpush2.bf16.msra.mxu0 0
    %819 = vmatprep.subr.bf16.mxu0 0
    %820 = vmatpush2.bf16.msra.mxu0 0
    %821 = vmatprep.subr.bf16.mxu0 0
    %822 = vmatpush2.bf16.msra.mxu0 0
    %823 = vmatprep.subr.bf16.mxu0 0
    %824 = vmatpush2.bf16.msra.mxu0 0
    %825 = vmatprep.subr.bf16.mxu0 0
    %826 = vmatpush2.bf16.msra.mxu0 0
    %827 = vmatprep.subr.bf16.mxu0 0
    %828 = vmatpush2.bf16.msra.mxu0 0
    %829 = vmatprep.mubr.bf16.mxu0 0
    %830 = vmatmul.mubr.bf16.gmra.mxu0 %v725
    %v831 = vpop.f32.mrf.mxu0
    %v832 = vadd.f32 %v747, %v831
    %v833 = vpop.f32.mrf.mxu0
    %v834 = vpop.f32.mrf.mxu0
    %v835 = vpop.f32.mrf.mxu0
    %836 = vdwg.mxu0
    %837 = vmax.xlane.f32.xlu0 %v832
    %v838 = vpop.xlane.xlu0 %837
    %v839 = vsub.f32 %v832, %v838
    %v840 = vmul.f32 %v839, 1.442695
    %v841 = vpow.pop %v840
    %842 = vadd.xlane.f32.xlu0 %v841
    %v843 = vpop.xlane.xlu0 %842
    %v844 = vrcp.pop %v843
    %v845 = vmul.f32 1.0, %v844
    %v846 = vmul.f32 %v841, %v845
    %vm847 = vcmask 80896
    %848 = vst.msk [vmem:[#allocation2] sm:$0xff] %vm847, %v846
    // Predicated region
    $region30: #{linear_model_forward.1} parent=1 // pred_check
      _
    $region31: #{linear_model_forward.1} parent=1 // pred_check_branch
      %850 = sbr.rel (0) target = $region33
    $region32: #{linear_model_forward.1} parent=1 // pred_region
      %s852 = ssub.s32 128, 128
      %853 = vsyncadd [#allocation3], %s852
      %s855 = sshll.u32 [#allocation2], 4
      %s856 = int_to_ptr.vmem [resolvable:$true] %s855
      %858 = dma.vmem_to_hbm [thread:$0]  %s856, 128, %s7, [#allocation3]
    $region33: #{linear_model_forward.1} parent=1 // pred_fallthru
      _
    // Predicated region
    $region34: #{linear_model_forward.1} parent=1 // pred_check
      _
    $region35: #{linear_model_forward.1} parent=1 // pred_check_branch
      %860 = sbr.rel (0) target = $region37
    $region36: #{linear_model_forward.1} parent=1 // pred_region
      %861 = dma.done [#allocation3], 128
    $region37: #{linear_model_forward.1} parent=1 // pred_fallthru
      _
    %862 = vsyncpa [#allocation3], 1

</llo_original>
